<compile_context>
chip_gen: v5e
topology: v5e:2x2
jax: 0.10.0
libtpu: 0.0.40
codegen_flags: <defaults>
</compile_context>

<pallas_src>
import functools

import jax
import jax.numpy as jnp
from jax import lax
from jax.experimental import pallas as pl
from jax.experimental.pallas import tpu as pltpu


_LN_EPS = 1e-5
_VMEM_LIMIT = 64 * 1024 * 1024


# ----------------------------------------------------------------------------
# helpers
# ----------------------------------------------------------------------------
def _round_up(x, m):
    return ((x + m - 1) // m) * m


def _pad2(x, rows, cols):
    r, c = x.shape
    if r == rows and c == cols:
        return x
    return jnp.pad(x, ((0, rows - r), (0, cols - c)))


# ----------------------------------------------------------------------------
# tiled linear:  out = a @ w_t + bias      (w_t already [K, N])
# ----------------------------------------------------------------------------
def _linear_kernel(a_ref, w_ref, b_ref, o_ref, acc_ref):
    k = pl.program_id(2)

    @pl.when(k == 0)
    def _():
        acc_ref[...] = jnp.zeros_like(acc_ref)

    acc_ref[...] += jnp.dot(
        a_ref[...], w_ref[...], preferred_element_type=jnp.float32
    )

    @pl.when(k == pl.num_programs(2) - 1)
    def _():
        o_ref[...] = (acc_ref[...] + b_ref[...]).astype(o_ref.dtype)


def pallas_linear(a, w_t, bias=None, *, tm=512, tn=512, tk=512):
    """`a @ w_t + bias` with an MxNxK tiled grid and f32 accumulation.

    Operands are passed in their compute dtype (bf16 on the fast path); the
    bias is kept/added in f32.  512x512x512 tiles keep per-step overhead low
    and fit well under the scoped-VMEM limits of v5e/v6e/v7x (limit is raised
    explicitly below); tiles are clamped to the (padded) problem size.
    """
    M, K = a.shape
    Kw, N = w_t.shape
    assert K == Kw, (K, Kw)
    out_dtype = a.dtype

    # Pad to (8, 128)-aligned, tile-divisible shapes (zero padding is exact for
    # the matmul; padded rows/cols are sliced off below).  Pads are no-ops when
    # the caller already provides aligned operands (weights are pre-padded once
    # in prepare_params).
    Mp = _round_up(M, 8)
    Np = _round_up(N, 128)
    Kp = _round_up(K, 128)
    tm = min(tm, Mp)
    tn = min(tn, Np)
    tk = min(tk, Kp)
    Mp = _round_up(Mp, tm)
    Np = _round_up(Np, tn)
    Kp = _round_up(Kp, tk)

    a_p = _pad2(a, Mp, Kp)
    w_p = _pad2(w_t, Kp, Np)
    if bias is None:
        b_p = jnp.zeros((1, Np), dtype=jnp.float32)
    else:
        b_p = _pad2(bias.reshape(1, N).astype(jnp.float32), 1, Np)

    grid = (Mp // tm, Np // tn, Kp // tk)
    flops = 2 * Mp * Np * Kp
    bytes_accessed = int(
        a_p.size * a_p.dtype.itemsize
        + w_p.size * w_p.dtype.itemsize
        + Mp * Np * jnp.dtype(out_dtype).itemsize
    )

    out = pl.pallas_call(
        _linear_kernel,
        out_shape=jax.ShapeDtypeStruct((Mp, Np), out_dtype),
        grid_spec=pltpu.PrefetchScalarGridSpec(
            num_scalar_prefetch=0,
            grid=grid,
            in_specs=[
                pl.BlockSpec((tm, tk), lambda i, j, k: (i, k)),
                pl.BlockSpec((tk, tn), lambda i, j, k: (k, j)),
                pl.BlockSpec((1, tn), lambda i, j, k: (0, j)),
            ],
            out_specs=pl.BlockSpec((tm, tn), lambda i, j, k: (i, j)),
            scratch_shapes=[pltpu.VMEM((tm, tn), jnp.float32)],
        ),
        compiler_params=pltpu.CompilerParams(
            dimension_semantics=("parallel", "parallel", "arbitrary"),
            vmem_limit_bytes=_VMEM_LIMIT,
        ),
        cost_estimate=pl.CostEstimate(
            flops=flops, transcendentals=0, bytes_accessed=bytes_accessed
        ),
    )(a_p, w_p, b_p)
    return out[:M, :N]


# ----------------------------------------------------------------------------
# row-wise layer norm (used once for K, hoisted out of the attention loop)
# ----------------------------------------------------------------------------
def _layernorm_kernel(x_ref, o_ref, *, eps):
    x = x_ref[...].astype(jnp.float32)
    mu = jnp.mean(x, axis=-1, keepdims=True)
    xc = x - mu
    var = jnp.mean(xc * xc, axis=-1, keepdims=True)
    o_ref[...] = (xc * lax.rsqrt(var + eps)).astype(o_ref.dtype)


def pallas_layernorm(x, *, eps=_LN_EPS, tr=512):
    """Row-wise layer norm over the last axis; rows must be a multiple of 8."""
    R, D = x.shape
    assert R % 8 == 0, R
    tr = min(tr, R)
    if R % tr:
        tr = 128 if R % 128 == 0 else 8

    return pl.pallas_call(
        functools.partial(_layernorm_kernel, eps=eps),
        out_shape=jax.ShapeDtypeStruct((R, D), x.dtype),
        grid_spec=pltpu.PrefetchScalarGridSpec(
            num_scalar_prefetch=0,
            grid=(R // tr,),
            in_specs=[pl.BlockSpec((tr, D), lambda i: (i, 0))],
            out_specs=pl.BlockSpec((tr, D), lambda i: (i, 0)),
        ),
        compiler_params=pltpu.CompilerParams(
            dimension_semantics=("parallel",),
            vmem_limit_bytes=_VMEM_LIMIT,
        ),
    )(x)


# ----------------------------------------------------------------------------
# fused global attention + GNN blend + classifier epilogue
#   LN(Q) per tile, scores = Qn @ Kn^T (Kn^T precomputed), masked softmax over
#   the padded key axis, Z_A = attn @ V, Z_out = (1-a) Z_A + a G,
#   Y = Z_out @ W_cls + b_cls     (W_cls/b_cls resident in VMEM)
# ----------------------------------------------------------------------------
def _attention_kernel(q_ref, knt_ref, v_ref, g_ref, wc_ref, bc_ref,
                      y_ref, aw_ref, *, alpha, eps, n_keys, compute_dtype):
    f32 = jnp.float32

    # --- LN(Q) for this query tile (f32 statistics) -------------------------
    q = q_ref[...].astype(f32)
    mu = jnp.mean(q, axis=-1, keepdims=True)
    qc = q - mu
    var = jnp.mean(qc * qc, axis=-1, keepdims=True)
    qn = (qc * lax.rsqrt(var + eps)).astype(compute_dtype)

    # --- scores against pre-normalized, pre-transposed keys -----------------
    s = jnp.dot(qn, knt_ref[...], preferred_element_type=f32)      # (tq, Nk)
    key_idx = lax.broadcasted_iota(jnp.int32, s.shape, 1)
    s = jnp.where(key_idx < n_keys, s, -1e30)                      # mask pad keys

    # --- exact softmax over the (masked) key axis ----------------------------
    m = jnp.max(s, axis=-1, keepdims=True)
    e = jnp.exp(s - m)
    denom = jnp.sum(e, axis=-1, keepdims=True)
    p = e * pl.reciprocal(denom, approx=(compute_dtype != jnp.float32))

    # --- attention output, GNN blend, classifier epilogue --------------------
    z_a = jnp.dot(p.astype(compute_dtype), v_ref[...],
                  preferred_element_type=f32)
    z = (1.0 - alpha) * z_a + alpha * g_ref[...].astype(f32)
    y = jnp.dot(z.astype(compute_dtype), wc_ref[...],
                preferred_element_type=f32) + bc_ref[...].astype(f32)

    y_ref[...] = y.astype(y_ref.dtype)
    aw_ref[...] = p.astype(aw_ref.dtype)


def pallas_attention(q, knt, v, g, w_cls_t, b_cls, *, alpha, n_keys,
                     tq=256, eps=_LN_EPS, compute_dtype=jnp.float32,
                     attn_dtype=jnp.float32, y_dtype=jnp.float32):
    """Returns (Y_hat_padded_cols, attention_weights_padded_cols), rows sliced.

    q, g:    [N, D]        (compute dtype)
    knt:     [D, Nk]       pre-normalized K, transposed, Nk = round_up(N, 128)
    v:       [Nk, D]
    w_cls_t: [D, Cp]       Cp = round_up(num_classes, 128)   (lane-dense out)
    b_cls:   [1, Cp]       (f32)
    """
    N, D = q.shape
    Dk, Nk = knt.shape
    assert Dk == D and v.shape == (Nk, D), (knt.shape, v.shape)
    Cp = w_cls_t.shape[1]

    # Tile only the query rows; K/V stay resident so the softmax is exact.
    # TODO(synk): for very large graphs (K/V + [tq,Nk] temporaries approaching
    # VMEM, esp. v7x's 64 MiB) switch to a key-tiled online-softmax loop.
    Np = _round_up(N, 8)
    tq = min(tq, Np)
    if Np >= 16 and Np // tq < 2:
        tq = _round_up(Np // 2, 8)   # >= 2 query tiles -> both v7x TCs busy
    Np = _round_up(Np, tq)

    q_p = _pad2(q, Np, D)
    g_p = _pad2(g, Np, D)

    kernel = functools.partial(
        _attention_kernel, alpha=float(alpha), eps=eps, n_keys=n_keys,
        compute_dtype=compute_dtype)

    y, attn = pl.pallas_call(
        kernel,
        out_shape=(
            jax.ShapeDtypeStruct((Np, Cp), y_dtype),
            jax.ShapeDtypeStruct((Np, Nk), attn_dtype),
        ),
        grid_spec=pltpu.PrefetchScalarGridSpec(
            num_scalar_prefetch=0,
            grid=(Np // tq,),
            in_specs=[
                pl.BlockSpec((tq, D), lambda i: (i, 0)),   # Q tile
                pl.BlockSpec((D, Nk), lambda i: (0, 0)),   # LN(K)^T (resident)
                pl.BlockSpec((Nk, D), lambda i: (0, 0)),   # V (resident)
                pl.BlockSpec((tq, D), lambda i: (i, 0)),   # GNN branch tile
                pl.BlockSpec((D, Cp), lambda i: (0, 0)),   # W_cls^T (resident)
                pl.BlockSpec((1, Cp), lambda i: (0, 0)),   # b_cls  (resident)
            ],
            out_specs=[
                pl.BlockSpec((tq, Cp), lambda i: (i, 0)),  # Y_hat tile
                pl.BlockSpec((tq, Nk), lambda i: (i, 0)),  # attn weights tile
            ],
        ),
        compiler_params=pltpu.CompilerParams(
            dimension_semantics=("parallel",),
            vmem_limit_bytes=_VMEM_LIMIT,
        ),
    )(q_p, knt, v, g_p, w_cls_t, b_cls)
    return y[:N], attn[:N]


# ----------------------------------------------------------------------------
# one-time parameter preparation (transposes, QKV/GNN fusion, classifier pad,
# dtype casts) -- hoisted out of the per-forward hot path
# ----------------------------------------------------------------------------
def prepare_params(params, *, compute_dtype=jnp.bfloat16):
    D = params["w_q"].shape[0]
    C = params["w_cls"].shape[0]
    Cp = _round_up(C, 128)
    cdt = compute_dtype
    w_qkvg_t = jnp.concatenate(
        [params["w_q"].T, params["w_k"].T, params["w_v"].T, params["w_gnn"].T],
        axis=1).astype(cdt)                                    # [D, 4D]
    b_qkvg = jnp.concatenate(
        [params["b_q"], params["b_k"], params["b_v"], params["b_gnn"]]
    ).astype(jnp.float32)                                      # [4D]
    return {
        "w_emb_t": params["w_emb"].T.astype(cdt),              # [F, D]
        "b_emb": params["b_emb"].astype(jnp.float32),
        "w_qkvg_t": w_qkvg_t,
        "b_qkvg": b_qkvg,
        "w_cls_t": _pad2(params["w_cls"].T.astype(cdt), D, Cp),          # [D, Cp]
        "b_cls": _pad2(params["b_cls"].reshape(1, C).astype(jnp.float32), 1, Cp),
    }


# ----------------------------------------------------------------------------
# full forward
# ----------------------------------------------------------------------------
@functools.partial(
    jax.jit,
    static_argnames=("alpha", "num_classes", "compute_dtype", "attn_dtype"))
def graph_transformer_forward(X, A, prepared, *, alpha, num_classes,
                              compute_dtype=jnp.bfloat16,
                              attn_dtype=jnp.float32):
    cdt = compute_dtype
    n = X.shape[0]
    D = prepared["w_qkvg_t"].shape[0]

    # Embedding MLP (activations kept in the MXU compute dtype end to end,
    # every matmul accumulates in f32).
    z0 = pallas_linear(X.astype(cdt), prepared["w_emb_t"], prepared["b_emb"])

    # Fused Q/K/V/GNN projection: z0 is read once, one kernel launch, wide N.
    zp = pallas_linear(z0, prepared["w_qkvg_t"], prepared["b_qkvg"])   # [n, 4D]
    q = zp[:, :D]
    k = zp[:, D:2 * D]
    v = zp[:, 2 * D:3 * D]
    h = zp[:, 3 * D:]

    # GNN branch:  A @ (Z_0 W_gnn^T + b_gnn)
    # TODO(synk): torch.spmm's sparse adjacency is computed as a dense matmul.
    g = pallas_linear(A.astype(cdt), h, None)

    # LN(K) computed ONCE (not per query tile); node axis padded to a
    # lane-dense multiple of 128 and transposed once so the score matmul is a
    # plain [tq, D] x [D, Nk].  Padded keys are masked inside the kernel.
    nk = _round_up(n, 128)
    kn = pallas_layernorm(_pad2(k, nk, D))                     # [Nk, D]
    knt = kn.T                                                 # [D, Nk]
    v_p = _pad2(v, nk, D)                                      # [Nk, D]

    y, attn = pallas_attention(
        q, knt, v_p, g, prepared["w_cls_t"], prepared["b_cls"],
        alpha=alpha, n_keys=n, compute_dtype=cdt, attn_dtype=attn_dtype)
    return y[:, :num_classes], attn[:, :n]


# ----------------------------------------------------------------------------
# pure-JAX reference (mirrors the PyTorch module, all f32)
# ----------------------------------------------------------------------------
def ref_forward(X, A, p, alpha, eps=_LN_EPS):
    def lin(x, w, b):
        return x @ w.T + b

    def ln(x):
        mu = x.mean(-1, keepdims=True)
        var = ((x - mu) ** 2).mean(-1, keepdims=True)
        return (x - mu) / jnp.sqrt(var + eps)

    z0 = lin(X, p["w_emb"], p["b_emb"])
    q = ln(lin(z0, p["w_q"], p["b_q"]))
    k = ln(lin(z0, p["w_k"], p["b_k"]))
    v = lin(z0, p["w_v"], p["b_v"])
    attn = jax.nn.softmax(q @ k.T, axis=-1)
    z_a = attn @ v
    g = A @ lin(z0, p["w_gnn"], p["b_gnn"])
    z_out = (1.0 - alpha) * z_a + alpha * g
    return lin(z_out, p["w_cls"], p["b_cls"]), attn


if __name__ == "__main__":
    key = jax.random.PRNGKey(0)
    num_nodes, num_features, embedding_dim, num_classes = 8, 16, 32, 8
    alpha = 0.25

    keys = jax.random.split(key, 14)

    def init_linear(kw, kb, out_f, in_f):
        bound = 1.0 / (in_f ** 0.5)
        w = jax.random.uniform(kw, (out_f, in_f), jnp.float32, -bound, bound)
        b = jax.random.uniform(kb, (out_f,), jnp.float32, -bound, bound)
        return w, b

    params = {}
    params["w_emb"], params["b_emb"] = init_linear(keys[0], keys[1], embedding_dim, num_features)
    params["w_q"], params["b_q"] = init_linear(keys[2], keys[3], embedding_dim, embedding_dim)
    params["w_k"], params["b_k"] = init_linear(keys[4], keys[5], embedding_dim, embedding_dim)
    params["w_v"], params["b_v"] = init_linear(keys[6], keys[7], embedding_dim, embedding_dim)
    params["w_gnn"], params["b_gnn"] = init_linear(keys[8], keys[9], embedding_dim, embedding_dim)
    params["w_cls"], params["b_cls"] = init_linear(keys[10], keys[11], num_classes, embedding_dim)

    X = jax.random.normal(keys[12], (num_nodes, num_features), jnp.float32)
    A_raw = jax.random.uniform(keys[13], (num_nodes, num_nodes), jnp.float32)
    A = (A_raw > 0.5).astype(jnp.float32) + jnp.eye(num_nodes, dtype=jnp.float32)

    y_ref, attn_ref = ref_forward(X, A, params, alpha)

    # f32 path: tight check of the kernel/tiling logic against the reference.
    # bf16 path (production default on v5e/v6e/v7x): bf16 MXU numerics vs. an
    # f32 reference, hence the loose tolerance (f32 accumulation is kept).
    for cdt, tol in ((jnp.float32, 2e-3), (jnp.bfloat16, 1e-1)):
        prepared = prepare_params(params, compute_dtype=cdt)
        y_hat, attn = graph_transformer_forward(
            X, A, prepared, alpha=alpha, num_classes=num_classes,
            compute_dtype=cdt)
        jax.block_until_ready((y_hat, attn))

        assert y_hat.shape == (num_nodes, num_classes)
        assert attn.shape == (num_nodes, num_nodes)
        assert jnp.allclose(attn, attn_ref, atol=tol, rtol=tol), cdt
        assert jnp.allclose(y_hat, y_ref, atol=tol, rtol=tol), cdt

    print("KERNEL_OK")
</pallas_src>

<mosaic_0001>
module attributes {stable_mosaic.version = 11 : i64} {
  func.func @_linear_kernel(%arg0: i32, %arg1: i32, %arg2: i32, %arg3: memref<8x128xf32, #tpu.memory_space<vmem>>, %arg4: memref<128x128xf32, #tpu.memory_space<vmem>>, %arg5: memref<1x128xf32, #tpu.memory_space<vmem>>, %arg6: memref<8x128xf32, #tpu.memory_space<vmem>>, %arg7: memref<8x128xf32, #tpu.memory_space<vmem>>) attributes {dimension_semantics = [#tpu.dimension_semantics<parallel>, #tpu.dimension_semantics<parallel>, #tpu.dimension_semantics<arbitrary>], iteration_bounds = array<i64: 1, 1, 1>, scalar_prefetch = 0 : i64, scratch_operands = 1 : i64, tpu.core_type = #tpu.core_type<tc>, window_params = [{transform_indices = @transform_0, window_bounds = array<i64: 8, 128>}, {transform_indices = @transform_1, window_bounds = array<i64: 128, 128>}, {transform_indices = @transform_2, window_bounds = array<i64: 1, 128>}, {transform_indices = @transform_3, window_bounds = array<i64: 8, 128>}]} {
    %c0_i32 = arith.constant 0 : i32
    %0 = arith.cmpi eq, %arg2, %c0_i32 : i32
    %1 = arith.extui %0 : i1 to i32
    %c0_i32_0 = arith.constant 0 : i32
    %2 = arith.cmpi ne, %1, %c0_i32_0 : i32
    scf.if %2 {
      %cst_10 = arith.constant 0.000000e+00 : f32
      %12 = vector.broadcast %cst_10 : f32 to vector<8x128xf32>
      %c0_11 = arith.constant 0 : index
      %c0_12 = arith.constant 0 : index
      %13 = vector.load %arg7[%c0_11, %c0_12] : memref<8x128xf32, #tpu.memory_space<vmem>>, vector<8x128xf32>
      tpu.vector_store %arg7[%c0_11, %c0_12], %12 {strides = array<i32>} : memref<8x128xf32, #tpu.memory_space<vmem>>, vector<8x128xf32>,
    } else {
    }
    %c0 = arith.constant 0 : index
    %c0_1 = arith.constant 0 : index
    %3 = vector.load %arg7[%c0, %c0_1] : memref<8x128xf32, #tpu.memory_space<vmem>>, vector<8x128xf32>
    %c0_2 = arith.constant 0 : index
    %c0_3 = arith.constant 0 : index
    %4 = vector.load %arg3[%c0_2, %c0_3] : memref<8x128xf32, #tpu.memory_space<vmem>>, vector<8x128xf32>
    %c0_4 = arith.constant 0 : index
    %c0_5 = arith.constant 0 : index
    %5 = vector.load %arg4[%c0_4, %c0_5] : memref<128x128xf32, #tpu.memory_space<vmem>>, vector<128x128xf32>
    %cst = arith.constant dense<0.000000e+00> : vector<8x128xf32>
    %6 = tpu.matmul %4, %5, %cst {dimension_numbers = #tpu.dot_dimension_numbers<[1], [0], [0], [1], [0, 0, 1, 1], [], []>} : vector<8x128xf32>, vector<128x128xf32>, vector<8x128xf32> -> vector<8x128xf32>
    %7 = arith.addf %3, %6 : vector<8x128xf32>
    %c0_6 = arith.constant 0 : index
    %c0_7 = arith.constant 0 : index
    %8 = vector.load %arg7[%c0_6, %c0_7] : memref<8x128xf32, #tpu.memory_space<vmem>>, vector<8x128xf32>
    tpu.vector_store %arg7[%c0_6, %c0_7], %7 {strides = array<i32>} : memref<8x128xf32, #tpu.memory_space<vmem>>, vector<8x128xf32>,
    %c0_i32_8 = arith.constant 0 : i32
    %9 = arith.cmpi eq, %arg2, %c0_i32_8 : i32
    %10 = arith.extui %9 : i1 to i32
    %c0_i32_9 = arith.constant 0 : i32
    %11 = arith.cmpi ne, %10, %c0_i32_9 : i32
    scf.if %11 {
      %c0_10 = arith.constant 0 : index
      %c0_11 = arith.constant 0 : index
      %12 = vector.load %arg7[%c0_10, %c0_11] : memref<8x128xf32, #tpu.memory_space<vmem>>, vector<8x128xf32>
      %c0_12 = arith.constant 0 : index
      %c0_13 = arith.constant 0 : index
      %13 = vector.load %arg5[%c0_12, %c0_13] : memref<1x128xf32, #tpu.memory_space<vmem>>, vector<1x128xf32>
      %14 = vector.broadcast %13 : vector<1x128xf32> to vector<8x128xf32>
      %15 = arith.addf %12, %14 : vector<8x128xf32>
      %c0_14 = arith.constant 0 : index
      %c0_15 = arith.constant 0 : index
      %16 = vector.load %arg6[%c0_14, %c0_15] : memref<8x128xf32, #tpu.memory_space<vmem>>, vector<8x128xf32>
      tpu.vector_store %arg6[%c0_14, %c0_15], %15 {strides = array<i32>} : memref<8x128xf32, #tpu.memory_space<vmem>>, vector<8x128xf32>,
    } else {
    }
    return
  }
  func.func @transform_0(%arg0: i32, %arg1: i32, %arg2: i32) -> (i32, i32) {
    %c0_i32 = arith.constant 0 : i32
    return %arg0, %arg2 : i32, i32
  }
  func.func @transform_1(%arg0: i32, %arg1: i32, %arg2: i32) -> (i32, i32) {
    %c0_i32 = arith.constant 0 : i32
    return %arg2, %arg1 : i32, i32
  }
  func.func @transform_2(%arg0: i32, %arg1: i32, %arg2: i32) -> (i32, i32) {
    %c0_i32 = arith.constant 0 : i32
    %c0_i32_0 = arith.constant 0 : i32
    return %c0_i32, %arg1 : i32, i32
  }
  func.func @transform_3(%arg0: i32, %arg1: i32, %arg2: i32) -> (i32, i32) {
    %c0_i32 = arith.constant 0 : i32
    return %arg0, %arg1 : i32, i32
  }
}

module attributes {stable_mosaic.version = 11 : i64} {
  func.func @_layernorm_kernel(%arg0: i32, %arg1: memref<128x32xf32, #tpu.memory_space<vmem>>, %arg2: memref<128x32xf32, #tpu.memory_space<vmem>>) attributes {dimension_semantics = [#tpu.dimension_semantics<parallel>], iteration_bounds = array<i64: 1>, scalar_prefetch = 0 : i64, scratch_operands = 0 : i64, tpu.core_type = #tpu.core_type<tc>, window_params = [{transform_indices = @transform_0, window_bounds = array<i64: 128, 32>}, {transform_indices = @transform_1, window_bounds = array<i64: 128, 32>}]} {
    %c0 = arith.constant 0 : index
    %c0_0 = arith.constant 0 : index
    %0 = vector.load %arg1[%c0, %c0_0] : memref<128x32xf32, #tpu.memory_space<vmem>>, vector<128x32xf32>
    %cst = arith.constant dense<0.000000e+00> : vector<128xf32>
    %1 = vector.multi_reduction <add>, %0, %cst [1] : vector<128x32xf32> to vector<128xf32>
    %2 = vector.shape_cast %1 : vector<128xf32> to vector<128x1xf32>
    %cst_1 = arith.constant 3.200000e+01 : f32
    %3 = vector.broadcast %cst_1 : f32 to vector<128x1xf32>
    %4 = arith.divf %2, %3 : vector<128x1xf32>
    %5 = vector.broadcast %4 : vector<128x1xf32> to vector<128x32xf32>
    %6 = arith.subf %0, %5 : vector<128x32xf32>
    %7 = arith.mulf %6, %6 : vector<128x32xf32>
    %cst_2 = arith.constant dense<0.000000e+00> : vector<128xf32>
    %8 = vector.multi_reduction <add>, %7, %cst_2 [1] : vector<128x32xf32> to vector<128xf32>
    %9 = vector.shape_cast %8 : vector<128xf32> to vector<128x1xf32>
    %cst_3 = arith.constant 3.200000e+01 : f32
    %10 = vector.broadcast %cst_3 : f32 to vector<128x1xf32>
    %11 = arith.divf %9, %10 : vector<128x1xf32>
    %cst_4 = arith.constant 9.99999974E-6 : f32
    %12 = vector.broadcast %cst_4 : f32 to vector<128x1xf32>
    %13 = arith.addf %11, %12 : vector<128x1xf32>
    %14 = math.rsqrt %13 : vector<128x1xf32>
    %15 = vector.broadcast %14 : vector<128x1xf32> to vector<128x32xf32>
    %16 = arith.mulf %6, %15 : vector<128x32xf32>
    %c0_5 = arith.constant 0 : index
    %c0_6 = arith.constant 0 : index
    %17 = vector.load %arg2[%c0_5, %c0_6] : memref<128x32xf32, #tpu.memory_space<vmem>>, vector<128x32xf32>
    tpu.vector_store %arg2[%c0_5, %c0_6], %16 {strides = array<i32>} : memref<128x32xf32, #tpu.memory_space<vmem>>, vector<128x32xf32>,
    return
  }
  func.func @transform_0(%arg0: i32) -> (i32, i32) {
    %c0_i32 = arith.constant 0 : i32
    %c0_i32_0 = arith.constant 0 : i32
    return %arg0, %c0_i32 : i32, i32
  }
  func.func @transform_1(%arg0: i32) -> (i32, i32) {
    %c0_i32 = arith.constant 0 : i32
    %c0_i32_0 = arith.constant 0 : i32
    return %arg0, %c0_i32 : i32, i32
  }
}

module attributes {stable_mosaic.version = 11 : i64} {
  func.func @_attention_kernel(%arg0: i32, %arg1: memref<8x32xf32, #tpu.memory_space<vmem>>, %arg2: memref<32x128xf32, #tpu.memory_space<vmem>>, %arg3: memref<128x32xf32, #tpu.memory_space<vmem>>, %arg4: memref<8x32xf32, #tpu.memory_space<vmem>>, %arg5: memref<32x128xf32, #tpu.memory_space<vmem>>, %arg6: memref<1x128xf32, #tpu.memory_space<vmem>>, %arg7: memref<8x128xf32, #tpu.memory_space<vmem>>, %arg8: memref<8x128xf32, #tpu.memory_space<vmem>>) attributes {dimension_semantics = [#tpu.dimension_semantics<parallel>], iteration_bounds = array<i64: 1>, scalar_prefetch = 0 : i64, scratch_operands = 0 : i64, tpu.core_type = #tpu.core_type<tc>, window_params = [{transform_indices = @transform_0, window_bounds = array<i64: 8, 32>}, {pipeline_mode = #tpu.pipeline_mode<synchronous>, transform_indices = @transform_1, window_bounds = array<i64: 32, 128>}, {pipeline_mode = #tpu.pipeline_mode<synchronous>, transform_indices = @transform_2, window_bounds = array<i64: 128, 32>}, {transform_indices = @transform_3, window_bounds = array<i64: 8, 32>}, {pipeline_mode = #tpu.pipeline_mode<synchronous>, transform_indices = @transform_4, window_bounds = array<i64: 32, 128>}, {pipeline_mode = #tpu.pipeline_mode<synchronous>, transform_indices = @transform_5, window_bounds = array<i64: 1, 128>}, {transform_indices = @transform_6, window_bounds = array<i64: 8, 128>}, {transform_indices = @transform_7, window_bounds = array<i64: 8, 128>}]} {
    %c0 = arith.constant 0 : index
    %c0_0 = arith.constant 0 : index
    %0 = vector.load %arg1[%c0, %c0_0] : memref<8x32xf32, #tpu.memory_space<vmem>>, vector<8x32xf32>
    %cst = arith.constant dense<0.000000e+00> : vector<8xf32>
    %1 = vector.multi_reduction <add>, %0, %cst [1] : vector<8x32xf32> to vector<8xf32>
    %2 = vector.shape_cast %1 : vector<8xf32> to vector<8x1xf32>
    %cst_1 = arith.constant 3.200000e+01 : f32
    %3 = vector.broadcast %cst_1 : f32 to vector<8x1xf32>
    %4 = arith.divf %2, %3 : vector<8x1xf32>
    %5 = vector.broadcast %4 : vector<8x1xf32> to vector<8x32xf32>
    %6 = arith.subf %0, %5 : vector<8x32xf32>
    %7 = arith.mulf %6, %6 : vector<8x32xf32>
    %cst_2 = arith.constant dense<0.000000e+00> : vector<8xf32>
    %8 = vector.multi_reduction <add>, %7, %cst_2 [1] : vector<8x32xf32> to vector<8xf32>
    %9 = vector.shape_cast %8 : vector<8xf32> to vector<8x1xf32>
    %cst_3 = arith.constant 3.200000e+01 : f32
    %10 = vector.broadcast %cst_3 : f32 to vector<8x1xf32>
    %11 = arith.divf %9, %10 : vector<8x1xf32>
    %cst_4 = arith.constant 9.99999974E-6 : f32
    %12 = vector.broadcast %cst_4 : f32 to vector<8x1xf32>
    %13 = arith.addf %11, %12 : vector<8x1xf32>
    %14 = math.rsqrt %13 : vector<8x1xf32>
    %15 = vector.broadcast %14 : vector<8x1xf32> to vector<8x32xf32>
    %16 = arith.mulf %6, %15 : vector<8x32xf32>
    %c0_5 = arith.constant 0 : index
    %c0_6 = arith.constant 0 : index
    %17 = vector.load %arg2[%c0_5, %c0_6] : memref<32x128xf32, #tpu.memory_space<vmem>>, vector<32x128xf32>
    %cst_7 = arith.constant dense<0.000000e+00> : vector<8x128xf32>
    %18 = tpu.matmul %16, %17, %cst_7 {dimension_numbers = #tpu.dot_dimension_numbers<[1], [0], [0], [1], [0, 0, 1, 1], [], []>} : vector<8x32xf32>, vector<32x128xf32>, vector<8x128xf32> -> vector<8x128xf32>
    %19 = tpu.iota {dimensions = array<i32: 1>} : vector<8x128xi32>
    %c8_i32 = arith.constant 8 : i32
    %20 = vector.broadcast %c8_i32 : i32 to vector<8x128xi32>
    %21 = arith.cmpi slt, %19, %20 : vector<8x128xi32>
    %cst_8 = arith.constant -1.000000e+30 : f32
    %22 = vector.broadcast %cst_8 : f32 to vector<8x128xf32>
    %23 = arith.select %21, %18, %22 : vector<8x128xi1>, vector<8x128xf32>
    %cst_9 = arith.constant dense<0xFF800000> : vector<8xf32>
    %24 = vector.multi_reduction <maximumf>, %23, %cst_9 [1] : vector<8x128xf32> to vector<8xf32>
    %25 = vector.shape_cast %24 : vector<8xf32> to vector<8x1xf32>
    %26 = vector.broadcast %25 : vector<8x1xf32> to vector<8x128xf32>
    %27 = arith.subf %23, %26 : vector<8x128xf32>
    %28 = math.exp %27 : vector<8x128xf32>
    %cst_10 = arith.constant dense<0.000000e+00> : vector<8xf32>
    %29 = vector.multi_reduction <add>, %28, %cst_10 [1] : vector<8x128xf32> to vector<8xf32>
    %30 = vector.shape_cast %29 : vector<8xf32> to vector<8x1xf32>
    %31 = tpu.reciprocal %30 : vector<8x1xf32> -> vector<8x1xf32>
    %32 = vector.broadcast %31 : vector<8x1xf32> to vector<8x128xf32>
    %33 = arith.mulf %28, %32 : vector<8x128xf32>
    %c0_11 = arith.constant 0 : index
    %c0_12 = arith.constant 0 : index
    %34 = vector.load %arg3[%c0_11, %c0_12] : memref<128x32xf32, #tpu.memory_space<vmem>>, vector<128x32xf32>
    %cst_13 = arith.constant dense<0.000000e+00> : vector<8x32xf32>
    %35 = tpu.matmul %33, %34, %cst_13 {dimension_numbers = #tpu.dot_dimension_numbers<[1], [0], [0], [1], [0, 0, 1, 1], [], []>} : vector<8x128xf32>, vector<128x32xf32>, vector<8x32xf32> -> vector<8x32xf32>
    %cst_14 = arith.constant 7.500000e-01 : f32
    %36 = vector.broadcast %cst_14 : f32 to vector<8x32xf32>
    %37 = arith.mulf %36, %35 : vector<8x32xf32>
    %c0_15 = arith.constant 0 : index
    %c0_16 = arith.constant 0 : index
    %38 = vector.load %arg4[%c0_15, %c0_16] : memref<8x32xf32, #tpu.memory_space<vmem>>, vector<8x32xf32>
    %cst_17 = arith.constant 2.500000e-01 : f32
    %39 = vector.broadcast %cst_17 : f32 to vector<8x32xf32>
    %40 = arith.mulf %39, %38 : vector<8x32xf32>
    %41 = arith.addf %37, %40 : vector<8x32xf32>
    %c0_18 = arith.constant 0 : index
    %c0_19 = arith.constant 0 : index
    %42 = vector.load %arg5[%c0_18, %c0_19] : memref<32x128xf32, #tpu.memory_space<vmem>>, vector<32x128xf32>
    %cst_20 = arith.constant dense<0.000000e+00> : vector<8x128xf32>
    %43 = tpu.matmul %41, %42, %cst_20 {dimension_numbers = #tpu.dot_dimension_numbers<[1], [0], [0], [1], [0, 0, 1, 1], [], []>} : vector<8x32xf32>, vector<32x128xf32>, vector<8x128xf32> -> vector<8x128xf32>
    %c0_21 = arith.constant 0 : index
    %c0_22 = arith.constant 0 : index
    %44 = vector.load %arg6[%c0_21, %c0_22] : memref<1x128xf32, #tpu.memory_space<vmem>>, vector<1x128xf32>
    %45 = vector.broadcast %44 : vector<1x128xf32> to vector<8x128xf32>
    %46 = arith.addf %43, %45 : vector<8x128xf32>
    %c0_23 = arith.constant 0 : index
    %c0_24 = arith.constant 0 : index
    %47 = vector.load %arg7[%c0_23, %c0_24] : memref<8x128xf32, #tpu.memory_space<vmem>>, vector<8x128xf32>
    tpu.vector_store %arg7[%c0_23, %c0_24], %46 {strides = array<i32>} : memref<8x128xf32, #tpu.memory_space<vmem>>, vector<8x128xf32>,
    %c0_25 = arith.constant 0 : index
    %c0_26 = arith.constant 0 : index
    %48 = vector.load %arg8[%c0_25, %c0_26] : memref<8x128xf32, #tpu.memory_space<vmem>>, vector<8x128xf32>
    tpu.vector_store %arg8[%c0_25, %c0_26], %33 {strides = array<i32>} : memref<8x128xf32, #tpu.memory_space<vmem>>, vector<8x128xf32>,
    return
  }
  func.func @transform_0(%arg0: i32) -> (i32, i32) {
    %c0_i32 = arith.constant 0 : i32
    %c0_i32_0 = arith.constant 0 : i32
    return %arg0, %c0_i32 : i32, i32
  }
  func.func @transform_1(%arg0: i32) -> (i32, i32) {
    %c0_i32 = arith.constant 0 : i32
    %c0_i32_0 = arith.constant 0 : i32
    %c0_i32_1 = arith.constant 0 : i32
    return %c0_i32, %c0_i32_0 : i32, i32
  }
  func.func @transform_2(%arg0: i32) -> (i32, i32) {
    %c0_i32 = arith.constant 0 : i32
    %c0_i32_0 = arith.constant 0 : i32
    %c0_i32_1 = arith.constant 0 : i32
    return %c0_i32, %c0_i32_0 : i32, i32
  }
  func.func @transform_3(%arg0: i32) -> (i32, i32) {
    %c0_i32 = arith.constant 0 : i32
    %c0_i32_0 = arith.constant 0 : i32
    return %arg0, %c0_i32 : i32, i32
  }
  func.func @transform_4(%arg0: i32) -> (i32, i32) {
    %c0_i32 = arith.constant 0 : i32
    %c0_i32_0 = arith.constant 0 : i32
    %c0_i32_1 = arith.constant 0 : i32
    return %c0_i32, %c0_i32_0 : i32, i32
  }
  func.func @transform_5(%arg0: i32) -> (i32, i32) {
    %c0_i32 = arith.constant 0 : i32
    %c0_i32_0 = arith.constant 0 : i32
    %c0_i32_1 = arith.constant 0 : i32
    return %c0_i32, %c0_i32_0 : i32, i32
  }
  func.func @transform_6(%arg0: i32) -> (i32, i32) {
    %c0_i32 = arith.constant 0 : i32
    %c0_i32_0 = arith.constant 0 : i32
    return %arg0, %c0_i32 : i32, i32
  }
  func.func @transform_7(%arg0: i32) -> (i32, i32) {
    %c0_i32 = arith.constant 0 : i32
    %c0_i32_0 = arith.constant 0 : i32
    return %arg0, %c0_i32 : i32, i32
  }
}

</mosaic_0001>

<llo_original>
// kernel: graph_transformer_forward.8
$region0: #{graph_transformer_forward.8}
  #allocation0 [shape = 'u32[]', space=smem, size = 0x4, offset = 0x4, fixed_abs, tag = 'smem constant byte address 0x4 - core index']
  #allocation1 [shape = 'u32[72,128]{1,0:T(1,128)}', space=vmem, size = 0x9000, scoped, tag = 'internal scratch']
  %s0 = inlined_call_operand.vmem [shape: f32[128,32], index: 0, kind: input, shape index: {}]
  %s1 = inlined_call_operand.vmem [shape: f32[128,32], index: 1, kind: output, shape index: {}]
  %s2 = sld [smem:[#allocation0]]
  $region14: #{graph_transformer_forward.8} parent=0
    _
  %s4 = ssub.s32 1, %s2
  %s5 = scalar_select 0, %s4, %s2
  // Predicated region
  $region2: #{graph_transformer_forward.8} parent=0 // pred_check
    _
  $region3: #{graph_transformer_forward.8} parent=0 // pred_check_branch
    %7 = sbr.rel (0) target = $region5
  $region4: #{graph_transformer_forward.8} parent=0 // pred_region
    _
  $region5: #{graph_transformer_forward.8} parent=0 // pred_fallthru
    _
  %v8 = vld [vmem:[%s0] sm:$0xff]
  %v9 = vld [vmem:[%s0 + $0x8] sm:$0xff]
  %v10 = vld [vmem:[%s0 + $0x10] sm:$0xff]
  %v11 = vld [vmem:[%s0 + $0x18] sm:$0xff]
  %v12 = vld [vmem:[%s0 + $0x20] sm:$0xff]
  %v13 = vld [vmem:[%s0 + $0x28] sm:$0xff]
  %v14 = vld [vmem:[%s0 + $0x30] sm:$0xff]
  %v15 = vld [vmem:[%s0 + $0x38] sm:$0xff]
  %v16 = vld [vmem:[%s0 + $0x40] sm:$0xff]
  %v17 = vld [vmem:[%s0 + $0x48] sm:$0xff]
  %v18 = vld [vmem:[%s0 + $0x50] sm:$0xff]
  %v19 = vld [vmem:[%s0 + $0x58] sm:$0xff]
  %v20 = vld [vmem:[%s0 + $0x60] sm:$0xff]
  %v21 = vld [vmem:[%s0 + $0x68] sm:$0xff]
  %v22 = vld [vmem:[%s0 + $0x70] sm:$0xff]
  %v23 = vld [vmem:[%s0 + $0x78] sm:$0xff]
  %vm24 = vcmask 261120
  %v25 = vsel %vm24, %v8, 0.0
  %26 = vadd.xlane.f32.xlu0 %v25
  %v27 = vpop.xlane.xlu0 %26
  %v28 = vsel %vm24, %v9, 0.0
  %29 = vadd.xlane.f32.xlu0 %v28
  %v30 = vpop.xlane.xlu0 %29
  %v31 = vsel %vm24, %v10, 0.0
  %32 = vadd.xlane.f32.xlu0 %v31
  %v33 = vpop.xlane.xlu0 %32
  %v34 = vsel %vm24, %v11, 0.0
  %35 = vadd.xlane.f32.xlu0 %v34
  %v36 = vpop.xlane.xlu0 %35
  %v37 = vsel %vm24, %v12, 0.0
  %38 = vadd.xlane.f32.xlu0 %v37
  %v39 = vpop.xlane.xlu0 %38
  %v40 = vsel %vm24, %v13, 0.0
  %41 = vadd.xlane.f32.xlu0 %v40
  %v42 = vpop.xlane.xlu0 %41
  %v43 = vsel %vm24, %v14, 0.0
  %44 = vadd.xlane.f32.xlu0 %v43
  %v45 = vpop.xlane.xlu0 %44
  %v46 = vsel %vm24, %v15, 0.0
  %47 = vadd.xlane.f32.xlu0 %v46
  %v48 = vpop.xlane.xlu0 %47
  %v49 = vsel %vm24, %v16, 0.0
  %50 = vadd.xlane.f32.xlu0 %v49
  %v51 = vpop.xlane.xlu0 %50
  %v52 = vsel %vm24, %v17, 0.0
  %53 = vadd.xlane.f32.xlu0 %v52
  %v54 = vpop.xlane.xlu0 %53
  %v55 = vsel %vm24, %v18, 0.0
  %56 = vadd.xlane.f32.xlu0 %v55
  %v57 = vpop.xlane.xlu0 %56
  %v58 = vsel %vm24, %v19, 0.0
  %59 = vadd.xlane.f32.xlu0 %v58
  %v60 = vpop.xlane.xlu0 %59
  %v61 = vsel %vm24, %v20, 0.0
  %62 = vadd.xlane.f32.xlu0 %v61
  %v63 = vpop.xlane.xlu0 %62
  %v64 = vsel %vm24, %v21, 0.0
  %65 = vadd.xlane.f32.xlu0 %v64
  %v66 = vpop.xlane.xlu0 %65
  %v67 = vsel %vm24, %v22, 0.0
  %68 = vadd.xlane.f32.xlu0 %v67
  %v69 = vpop.xlane.xlu0 %68
  %v70 = vsel %vm24, %v23, 0.0
  %71 = vadd.xlane.f32.xlu0 %v70
  %v72 = vpop.xlane.xlu0 %71
  %v73 = vrcp.pop 32.0
  %v74 = vmul.f32 32.0, %v73
  %v75 = vsub.f32 1.0, %v74
  %v76 = vmul.f32 %v73, %v75
  %v77 = vadd.f32 %v73, %v76
  %vm78 = vweird.f32 %v73
  %v79 = vsel %vm78, %v73, %v77
  %v80 = vmul.f32 %v27, %v79
  %v81 = vmul.f32 %v30, %v79
  %v82 = vmul.f32 %v33, %v79
  %v83 = vmul.f32 %v36, %v79
  %v84 = vmul.f32 %v39, %v79
  %v85 = vmul.f32 %v42, %v79
  %v86 = vmul.f32 %v45, %v79
  %v87 = vmul.f32 %v48, %v79
  %v88 = vmul.f32 %v51, %v79
  %v89 = vmul.f32 %v54, %v79
  %v90 = vmul.f32 %v57, %v79
  %v91 = vmul.f32 %v60, %v79
  %v92 = vmul.f32 %v63, %v79
  %v93 = vmul.f32 %v66, %v79
  %v94 = vmul.f32 %v69, %v79
  %v95 = vmul.f32 %v72, %v79
  %v96 = vsub.f32 %v8, %v80
  %v97 = vsub.f32 %v9, %v81
  %v98 = vsub.f32 %v10, %v82
  %v99 = vsub.f32 %v11, %v83
  %v100 = vsub.f32 %v12, %v84
  %v101 = vsub.f32 %v13, %v85
  %v102 = vsub.f32 %v14, %v86
  %v103 = vsub.f32 %v15, %v87
  %v104 = vsub.f32 %v16, %v88
  %v105 = vsub.f32 %v17, %v89
  %v106 = vsub.f32 %v18, %v90
  %v107 = vsub.f32 %v19, %v91
  %v108 = vsub.f32 %v20, %v92
  %v109 = vsub.f32 %v21, %v93
  %v110 = vsub.f32 %v22, %v94
  %v111 = vsub.f32 %v23, %v95
  %v112 = vmul.f32 %v96, %v96
  %v113 = vmul.f32 %v97, %v97
  %v114 = vmul.f32 %v98, %v98
  %v115 = vmul.f32 %v99, %v99
  %v116 = vmul.f32 %v100, %v100
  %v117 = vmul.f32 %v101, %v101
  %v118 = vmul.f32 %v102, %v102
  %v119 = vmul.f32 %v103, %v103
  %v120 = vmul.f32 %v104, %v104
  %v121 = vmul.f32 %v105, %v105
  %v122 = vmul.f32 %v106, %v106
  %v123 = vmul.f32 %v107, %v107
  %v124 = vmul.f32 %v108, %v108
  %v125 = vmul.f32 %v109, %v109
  %v126 = vmul.f32 %v110, %v110
  %v127 = vmul.f32 %v111, %v111
  %v128 = vsel %vm24, %v112, 0.0
  %129 = vadd.xlane.f32.xlu0 %v128
  %v130 = vpop.xlane.xlu0 %129
  %v131 = vsel %vm24, %v113, 0.0
  %132 = vadd.xlane.f32.xlu0 %v131
  %v133 = vpop.xlane.xlu0 %132
  %v134 = vsel %vm24, %v114, 0.0
  %135 = vadd.xlane.f32.xlu0 %v134
  %v136 = vpop.xlane.xlu0 %135
  %v137 = vsel %vm24, %v115, 0.0
  %138 = vadd.xlane.f32.xlu0 %v137
  %v139 = vpop.xlane.xlu0 %138
  %v140 = vsel %vm24, %v116, 0.0
  %141 = vadd.xlane.f32.xlu0 %v140
  %v142 = vpop.xlane.xlu0 %141
  %v143 = vsel %vm24, %v117, 0.0
  %144 = vadd.xlane.f32.xlu0 %v143
  %v145 = vpop.xlane.xlu0 %144
  %v146 = vsel %vm24, %v118, 0.0
  %147 = vadd.xlane.f32.xlu0 %v146
  %v148 = vpop.xlane.xlu0 %147
  %v149 = vsel %vm24, %v119, 0.0
  %150 = vadd.xlane.f32.xlu0 %v149
  %v151 = vpop.xlane.xlu0 %150
  %v152 = vsel %vm24, %v120, 0.0
  %153 = vadd.xlane.f32.xlu0 %v152
  %v154 = vpop.xlane.xlu0 %153
  %v155 = vsel %vm24, %v121, 0.0
  %156 = vadd.xlane.f32.xlu0 %v155
  %v157 = vpop.xlane.xlu0 %156
  %v158 = vsel %vm24, %v122, 0.0
  %159 = vadd.xlane.f32.xlu0 %v158
  %v160 = vpop.xlane.xlu0 %159
  %v161 = vsel %vm24, %v123, 0.0
  %162 = vadd.xlane.f32.xlu0 %v161
  %v163 = vpop.xlane.xlu0 %162
  %v164 = vsel %vm24, %v124, 0.0
  %165 = vadd.xlane.f32.xlu0 %v164
  %v166 = vpop.xlane.xlu0 %165
  %v167 = vsel %vm24, %v125, 0.0
  %168 = vadd.xlane.f32.xlu0 %v167
  %v169 = vpop.xlane.xlu0 %168
  %v170 = vsel %vm24, %v126, 0.0
  %171 = vadd.xlane.f32.xlu0 %v170
  %v172 = vpop.xlane.xlu0 %171
  %v173 = vsel %vm24, %v127, 0.0
  %174 = vadd.xlane.f32.xlu0 %v173
  %v175 = vpop.xlane.xlu0 %174
  %v176 = vmul.f32 %v130, %v79
  %v177 = vmul.f32 %v133, %v79
  %v178 = vmul.f32 %v136, %v79
  %v179 = vmul.f32 %v139, %v79
  %v180 = vmul.f32 %v142, %v79
  %v181 = vmul.f32 %v145, %v79
  %v182 = vmul.f32 %v148, %v79
  %v183 = vmul.f32 %v151, %v79
  %v184 = vmul.f32 %v154, %v79
  %v185 = vmul.f32 %v157, %v79
  %v186 = vmul.f32 %v160, %v79
  %v187 = vmul.f32 %v163, %v79
  %v188 = vmul.f32 %v166, %v79
  %v189 = vmul.f32 %v169, %v79
  %v190 = vmul.f32 %v172, %v79
  %v191 = vmul.f32 %v175, %v79
  %v192 = vadd.f32 %v176, 1e-05
  %v193 = vadd.f32 %v177, 1e-05
  %v194 = vadd.f32 %v178, 1e-05
  %v195 = vadd.f32 %v179, 1e-05
  %v196 = vadd.f32 %v180, 1e-05
  %v197 = vadd.f32 %v181, 1e-05
  %v198 = vadd.f32 %v182, 1e-05
  %v199 = vadd.f32 %v183, 1e-05
  %v200 = vadd.f32 %v184, 1e-05
  %v201 = vadd.f32 %v185, 1e-05
  %v202 = vadd.f32 %v186, 1e-05
  %v203 = vadd.f32 %v187, 1e-05
  %v204 = vadd.f32 %v188, 1e-05
  %v205 = vadd.f32 %v189, 1e-05
  %v206 = vadd.f32 %v190, 1e-05
  %v207 = vadd.f32 %v191, 1e-05
  %v208 = vrsqrt.pop %v192
  %v209 = vmul.f32 %v208, %v192
  %v210 = vmul.f32 %v209, %v208
  %v211 = vmul.f32 0.5, %v210
  %v212 = vsub.f32 1.5, %v211
  %v213 = vmul.f32 %v208, %v212
  %vm214 = vweird.f32 %v192
  %vm215 = vweird.f32 %v208
  %vm216 = vmor %vm214, %vm215
  %v217 = vsel %vm216, %v208, %v213
  %v218 = vrsqrt.pop %v193
  %v219 = vmul.f32 %v218, %v193
  %v220 = vmul.f32 %v219, %v218
  %v221 = vmul.f32 0.5, %v220
  %v222 = vsub.f32 1.5, %v221
  %v223 = vmul.f32 %v218, %v222
  %vm224 = vweird.f32 %v193
  %vm225 = vweird.f32 %v218
  %vm226 = vmor %vm224, %vm225
  %v227 = vsel %vm226, %v218, %v223
  %v228 = vrsqrt.pop %v194
  %v229 = vmul.f32 %v228, %v194
  %v230 = vmul.f32 %v229, %v228
  %v231 = vmul.f32 0.5, %v230
  %v232 = vsub.f32 1.5, %v231
  %v233 = vmul.f32 %v228, %v232
  %vm234 = vweird.f32 %v194
  %vm235 = vweird.f32 %v228
  %vm236 = vmor %vm234, %vm235
  %v237 = vsel %vm236, %v228, %v233
  %v238 = vrsqrt.pop %v195
  %v239 = vmul.f32 %v238, %v195
  %v240 = vmul.f32 %v239, %v238
  %v241 = vmul.f32 0.5, %v240
  %v242 = vsub.f32 1.5, %v241
  %v243 = vmul.f32 %v238, %v242
  %vm244 = vweird.f32 %v195
  %vm245 = vweird.f32 %v238
  %vm246 = vmor %vm244, %vm245
  %v247 = vsel %vm246, %v238, %v243
  %v248 = vrsqrt.pop %v196
  %v249 = vmul.f32 %v248, %v196
  %v250 = vmul.f32 %v249, %v248
  %v251 = vmul.f32 0.5, %v250
  %v252 = vsub.f32 1.5, %v251
  %v253 = vmul.f32 %v248, %v252
  %vm254 = vweird.f32 %v196
  %vm255 = vweird.f32 %v248
  %vm256 = vmor %vm254, %vm255
  %v257 = vsel %vm256, %v248, %v253
  %v258 = vrsqrt.pop %v197
  %v259 = vmul.f32 %v258, %v197
  %v260 = vmul.f32 %v259, %v258
  %v261 = vmul.f32 0.5, %v260
  %v262 = vsub.f32 1.5, %v261
  %v263 = vmul.f32 %v258, %v262
  %vm264 = vweird.f32 %v197
  %vm265 = vweird.f32 %v258
  %vm266 = vmor %vm264, %vm265
  %v267 = vsel %vm266, %v258, %v263
  %v268 = vrsqrt.pop %v198
  %v269 = vmul.f32 %v268, %v198
  %v270 = vmul.f32 %v269, %v268
  %v271 = vmul.f32 0.5, %v270
  %v272 = vsub.f32 1.5, %v271
  %v273 = vmul.f32 %v268, %v272
  %vm274 = vweird.f32 %v198
  %vm275 = vweird.f32 %v268
  %vm276 = vmor %vm274, %vm275
  %v277 = vsel %vm276, %v268, %v273
  %v278 = vrsqrt.pop %v199
  %v279 = vmul.f32 %v278, %v199
  %v280 = vmul.f32 %v279, %v278
  %v281 = vmul.f32 0.5, %v280
  %v282 = vsub.f32 1.5, %v281
  %v283 = vmul.f32 %v278, %v282
  %vm284 = vweird.f32 %v199
  %vm285 = vweird.f32 %v278
  %vm286 = vmor %vm284, %vm285
  %v287 = vsel %vm286, %v278, %v283
  %v288 = vrsqrt.pop %v200
  %v289 = vmul.f32 %v288, %v200
  %v290 = vmul.f32 %v289, %v288
  %v291 = vmul.f32 0.5, %v290
  %v292 = vsub.f32 1.5, %v291
  %v293 = vmul.f32 %v288, %v292
  %vm294 = vweird.f32 %v200
  %vm295 = vweird.f32 %v288
  %vm296 = vmor %vm294, %vm295
  %v297 = vsel %vm296, %v288, %v293
  %v298 = vrsqrt.pop %v201
  %v299 = vmul.f32 %v298, %v201
  %v300 = vmul.f32 %v299, %v298
  %v301 = vmul.f32 0.5, %v300
  %v302 = vsub.f32 1.5, %v301
  %v303 = vmul.f32 %v298, %v302
  %vm304 = vweird.f32 %v201
  %vm305 = vweird.f32 %v298
  %vm306 = vmor %vm304, %vm305
  %v307 = vsel %vm306, %v298, %v303
  %v308 = vrsqrt.pop %v202
  %v309 = vmul.f32 %v308, %v202
  %v310 = vmul.f32 %v309, %v308
  %v311 = vmul.f32 0.5, %v310
  %v312 = vsub.f32 1.5, %v311
  %v313 = vmul.f32 %v308, %v312
  %vm314 = vweird.f32 %v202
  %vm315 = vweird.f32 %v308
  %vm316 = vmor %vm314, %vm315
  %v317 = vsel %vm316, %v308, %v313
  %v318 = vrsqrt.pop %v203
  %v319 = vmul.f32 %v318, %v203
  %v320 = vmul.f32 %v319, %v318
  %v321 = vmul.f32 0.5, %v320
  %v322 = vsub.f32 1.5, %v321
  %v323 = vmul.f32 %v318, %v322
  %vm324 = vweird.f32 %v203
  %vm325 = vweird.f32 %v318
  %vm326 = vmor %vm324, %vm325
  %v327 = vsel %vm326, %v318, %v323
  %v328 = vrsqrt.pop %v204
  %v329 = vmul.f32 %v328, %v204
  %v330 = vmul.f32 %v329, %v328
  %v331 = vmul.f32 0.5, %v330
  %v332 = vsub.f32 1.5, %v331
  %v333 = vmul.f32 %v328, %v332
  %vm334 = vweird.f32 %v204
  %vm335 = vweird.f32 %v328
  %vm336 = vmor %vm334, %vm335
  %v337 = vsel %vm336, %v328, %v333
  %v338 = vrsqrt.pop %v205
  %v339 = vmul.f32 %v338, %v205
  %v340 = vmul.f32 %v339, %v338
  %v341 = vmul.f32 0.5, %v340
  %v342 = vsub.f32 1.5, %v341
  %v343 = vmul.f32 %v338, %v342
  %vm344 = vweird.f32 %v205
  %vm345 = vweird.f32 %v338
  %vm346 = vmor %vm344, %vm345
  %v347 = vsel %vm346, %v338, %v343
  %v348 = vrsqrt.pop %v206
  %v349 = vmul.f32 %v348, %v206
  %v350 = vmul.f32 %v349, %v348
  %v351 = vmul.f32 0.5, %v350
  %v352 = vsub.f32 1.5, %v351
  %v353 = vmul.f32 %v348, %v352
  %vm354 = vweird.f32 %v206
  %vm355 = vweird.f32 %v348
  %vm356 = vmor %vm354, %vm355
  %v357 = vsel %vm356, %v348, %v353
  %v358 = vrsqrt.pop %v207
  %v359 = vmul.f32 %v358, %v207
  %v360 = vmul.f32 %v359, %v358
  %v361 = vmul.f32 0.5, %v360
  %v362 = vsub.f32 1.5, %v361
  %v363 = vmul.f32 %v358, %v362
  %vm364 = vweird.f32 %v207
  %vm365 = vweird.f32 %v358
  %vm366 = vmor %vm364, %vm365
  %v367 = vsel %vm366, %v358, %v363
  %v368 = vmul.f32 %v96, %v217
  %v369 = vmul.f32 %v97, %v227
  %v370 = vmul.f32 %v98, %v237
  %v371 = vmul.f32 %v99, %v247
  %v372 = vmul.f32 %v100, %v257
  %v373 = vmul.f32 %v101, %v267
  %v374 = vmul.f32 %v102, %v277
  %v375 = vmul.f32 %v103, %v287
  %v376 = vmul.f32 %v104, %v297
  %v377 = vmul.f32 %v105, %v307
  %v378 = vmul.f32 %v106, %v317
  %v379 = vmul.f32 %v107, %v327
  %v380 = vmul.f32 %v108, %v337
  %v381 = vmul.f32 %v109, %v347
  %v382 = vmul.f32 %v110, %v357
  %v383 = vmul.f32 %v111, %v367
  %384 = vst.msk [vmem:[%s1] sm:$0xff] %vm24, %v368
  %385 = vst.msk [vmem:[%s1 + $0x8] sm:$0xff] %vm24, %v369
  %386 = vst.msk [vmem:[%s1 + $0x10] sm:$0xff] %vm24, %v370
  %387 = vst.msk [vmem:[%s1 + $0x18] sm:$0xff] %vm24, %v371
  %388 = vst.msk [vmem:[%s1 + $0x20] sm:$0xff] %vm24, %v372
  %389 = vst.msk [vmem:[%s1 + $0x28] sm:$0xff] %vm24, %v373
  %390 = vst.msk [vmem:[%s1 + $0x30] sm:$0xff] %vm24, %v374
  %391 = vst.msk [vmem:[%s1 + $0x38] sm:$0xff] %vm24, %v375
  %392 = vst.msk [vmem:[%s1 + $0x40] sm:$0xff] %vm24, %v376
  %393 = vst.msk [vmem:[%s1 + $0x48] sm:$0xff] %vm24, %v377
  %394 = vst.msk [vmem:[%s1 + $0x50] sm:$0xff] %vm24, %v378
  %395 = vst.msk [vmem:[%s1 + $0x58] sm:$0xff] %vm24, %v379
  %396 = vst.msk [vmem:[%s1 + $0x60] sm:$0xff] %vm24, %v380
  %397 = vst.msk [vmem:[%s1 + $0x68] sm:$0xff] %vm24, %v381
  %398 = vst.msk [vmem:[%s1 + $0x70] sm:$0xff] %vm24, %v382
  %399 = vst.msk [vmem:[%s1 + $0x78] sm:$0xff] %vm24, %v383
  // Predicated region
  $region6: #{graph_transformer_forward.8} parent=0 // pred_check
    _
  $region7: #{graph_transformer_forward.8} parent=0 // pred_check_branch
    %401 = sbr.rel (0) target = $region9
  $region8: #{graph_transformer_forward.8} parent=0 // pred_region
    _
  $region9: #{graph_transformer_forward.8} parent=0 // pred_fallthru
    _
  // Predicated region
  $region10: #{graph_transformer_forward.8} parent=0 // pred_check
    _
  $region11: #{graph_transformer_forward.8} parent=0 // pred_check_branch
    %403 = sbr.rel (0) target = $region13
  $region12: #{graph_transformer_forward.8} parent=0 // pred_region
    _
  $region13: #{graph_transformer_forward.8} parent=0 // pred_fallthru
    _

// kernel: graph_transformer_forward.5
$region0: #{graph_transformer_forward.5}
  #allocation0 [shape = 'u32[]', space=smem, size = 0x4, offset = 0x4, fixed_abs, tag = 'smem constant byte address 0x4 - core index']
  #allocation1 [shape = 'u32[72,128]{1,0:T(1,128)}', space=vmem, size = 0x9000, scoped, tag = 'internal scratch']
  #allocation2 [shape = 'f32[8,128]{1,0:T(8,128)}', space=vmem, size = 0x1000, scoped, tag = 'scratch operand']
  %s0 = inlined_call_operand.vmem [shape: f32[8,128], index: 0, kind: input, shape index: {}]
  %s1 = inlined_call_operand.vmem [shape: f32[128,128], index: 1, kind: input, shape index: {}]
  %s2 = inlined_call_operand.vmem [shape: f32[1,128], index: 2, kind: input, shape index: {}]
  %s3 = inlined_call_operand.vmem [shape: f32[8,128], index: 3, kind: output, shape index: {}]
  %s4 = sld [smem:[#allocation0]]
  $region30: #{graph_transformer_forward.5} parent=0
    _
  %s6 = ssub.s32 1, %s4
  %s7 = scalar_select 0, %s6, %s4
  // Predicated region
  $region2: #{graph_transformer_forward.5} parent=0 // pred_check
    _
  $region3: #{graph_transformer_forward.5} parent=0 // pred_check_branch
    %9 = sbr.rel (0) target = $region5
  $region4: #{graph_transformer_forward.5} parent=0 // pred_region
    _
  $region5: #{graph_transformer_forward.5} parent=0 // pred_fallthru
    _
  // Predicated region
  $region6: #{graph_transformer_forward.5} parent=0 // pred_check
    _
  $region7: #{graph_transformer_forward.5} parent=0 // pred_check_branch
    %11 = sbr.rel (0) target = $region9
  $region8: #{graph_transformer_forward.5} parent=0 // pred_region
    _
  $region9: #{graph_transformer_forward.5} parent=0 // pred_fallthru
    _
  // Predicated region
  $region10: #{graph_transformer_forward.5} parent=0 // pred_check
    _
  $region11: #{graph_transformer_forward.5} parent=0 // pred_check_branch
    %13 = sbr.rel (0) target = $region13
  $region12: #{graph_transformer_forward.5} parent=0 // pred_region
    _
  $region13: #{graph_transformer_forward.5} parent=0 // pred_fallthru
    _
  %p14 = scmp.eq.s32.totalorder 0, 0
  // Predicated region
  $region14: #{graph_transformer_forward.5} parent=0 // pred_check
    %p15 = pneg %p14
  $region15: #{graph_transformer_forward.5} parent=0 // pred_check_branch
    %17 = sbr.rel (%p15) target = $region17
  $region16: #{graph_transformer_forward.5} parent=0 // pred_region
    %18 = vst [vmem:[#allocation2] sm:$0xff] 0.0
  $region17: #{graph_transformer_forward.5} parent=0 // pred_fallthru
    _
  %v19 = vld [vmem:[#allocation2] sm:$0xff]
  %v20 = vld [vmem:[%s0] sm:$0xff]
  %v21 = vld [vmem:[%s1] sm:$0xff]
  %v22 = vld [vmem:[%s1 + $0x8] sm:$0xff]
  %v23 = vld [vmem:[%s1 + $0x10] sm:$0xff]
  %v24 = vld [vmem:[%s1 + $0x18] sm:$0xff]
  %v25 = vld [vmem:[%s1 + $0x20] sm:$0xff]
  %v26 = vld [vmem:[%s1 + $0x28] sm:$0xff]
  %v27 = vld [vmem:[%s1 + $0x30] sm:$0xff]
  %v28 = vld [vmem:[%s1 + $0x38] sm:$0xff]
  %v29 = vld [vmem:[%s1 + $0x40] sm:$0xff]
  %v30 = vld [vmem:[%s1 + $0x48] sm:$0xff]
  %v31 = vld [vmem:[%s1 + $0x50] sm:$0xff]
  %v32 = vld [vmem:[%s1 + $0x58] sm:$0xff]
  %v33 = vld [vmem:[%s1 + $0x60] sm:$0xff]
  %v34 = vld [vmem:[%s1 + $0x68] sm:$0xff]
  %v35 = vld [vmem:[%s1 + $0x70] sm:$0xff]
  %v36 = vld [vmem:[%s1 + $0x78] sm:$0xff]
  %37 = vmatpush.msra.mxu0 %v36
  %38 = vmatpush.msra.mxu0 %v35
  %39 = vmatpush.msra.mxu0 %v34
  %40 = vmatpush.msra.mxu0 %v33
  %41 = vmatpush.msra.mxu0 %v32
  %42 = vmatpush.msra.mxu0 %v31
  %43 = vmatpush.msra.mxu0 %v30
  %44 = vmatpush.msra.mxu0 %v29
  %45 = vmatpush.msra.mxu0 %v28
  %46 = vmatpush.msra.mxu0 %v27
  %47 = vmatpush.msra.mxu0 %v26
  %48 = vmatpush.msra.mxu0 %v25
  %49 = vmatpush.msra.mxu0 %v24
  %50 = vmatpush.msra.mxu0 %v23
  %51 = vmatpush.msra.mxu0 %v22
  %52 = vmatpush.msra.mxu0 %v21
  %53 = vmatmul.f32.gmra.mxu0 %v20
  %v54 = vpop.f32.mrf.mxu0
  %v55 = vadd.f32 0.0, %v54
  %56 = vdwg.mxu0
  %v57 = vadd.f32 %v19, %v55
  %58 = vst [vmem:[#allocation2] sm:$0xff] %v57
  // Predicated region
  $region18: #{graph_transformer_forward.5} parent=0 // pred_check
    %p59 = pneg %p14
  $region19: #{graph_transformer_forward.5} parent=0 // pred_check_branch
    %61 = sbr.rel (%p59) target = $region21
  $region20: #{graph_transformer_forward.5} parent=0 // pred_region
    %v62 = vld [vmem:[#allocation2] sm:$0xff]
    %v63 = vld [vmem:[%s2] sm:$0x1]
    %v65 = vperm.slane %v63, 0
    %v67 = vadd.f32 %v62, %v65
    %68 = vst [vmem:[%s3] sm:$0xff] %v67
  $region21: #{graph_transformer_forward.5} parent=0 // pred_fallthru
    _
  // Predicated region
  $region22: #{graph_transformer_forward.5} parent=0 // pred_check
    _
  $region23: #{graph_transformer_forward.5} parent=0 // pred_check_branch
    %70 = sbr.rel (0) target = $region25
  $region24: #{graph_transformer_forward.5} parent=0 // pred_region
    _
  $region25: #{graph_transformer_forward.5} parent=0 // pred_fallthru
    _
  // Predicated region
  $region26: #{graph_transformer_forward.5} parent=0 // pred_check
    _
  $region27: #{graph_transformer_forward.5} parent=0 // pred_check_branch
    %72 = sbr.rel (0) target = $region29
  $region28: #{graph_transformer_forward.5} parent=0 // pred_region
    _
  $region29: #{graph_transformer_forward.5} parent=0 // pred_fallthru
    _

// kernel: graph_transformer_forward.9
$region0: #{graph_transformer_forward.9}
  #allocation0 [shape = 'u32[]', space=smem, size = 0x4, offset = 0x4, fixed_abs, tag = 'smem constant byte address 0x4 - core index']
  #allocation1 [shape = 'u32[72,128]{1,0:T(1,128)}', space=vmem, size = 0x9000, scoped, tag = 'internal scratch']
  %s0 = inlined_call_operand.vmem [shape: f32[8,32], index: 0, kind: input, shape index: {}]
  %s1 = inlined_call_operand.vmem [shape: f32[32,128], index: 1, kind: input, shape index: {}]
  %s2 = inlined_call_operand.vmem [shape: f32[128,32], index: 2, kind: input, shape index: {}]
  %s3 = inlined_call_operand.vmem [shape: f32[8,32], index: 3, kind: input, shape index: {}]
  %s4 = inlined_call_operand.vmem [shape: f32[32,128], index: 4, kind: input, shape index: {}]
  %s5 = inlined_call_operand.vmem [shape: f32[1,128], index: 5, kind: input, shape index: {}]
  %s6 = inlined_call_operand.hbm [shape: f32[8,128], index: 6, kind: output, shape index: {0}]
  %s7 = inlined_call_operand.hbm [shape: f32[8,128], index: 7, kind: output, shape index: {1}]
  %8 = xla_tuple %s6, %s7
  %s9 = sld [smem:[#allocation0]]
  $region42: #{graph_transformer_forward.9} parent=0
    _
  %s11 = ssub.s32 1, %s9
  %s12 = scalar_select 0, %s11, %s9
  $region1: #{graph_transformer_forward.9} parent=0
    #allocation2 [shape = 'u8[4096]{0}', space=vmem, size = 0x1000, scoped, tag = 'output window, operand 0, single buffered']
    #allocation3 [shape = 's32[1]{0}', space=sflag, size = 0x4, scoped, tag = 'scoped memory for graph_transformer_forward.9']
    #allocation4 [shape = 'u8[4096]{0}', space=vmem, size = 0x1000, scoped, tag = 'output window, operand 1, single buffered']
    #allocation5 [shape = 's32[1]{0}', space=sflag, size = 0x4, scoped, tag = 'scoped memory for graph_transformer_forward.9']
    %13 = vsyncpa [#allocation3], 0
    %14 = vsyncpa [#allocation5], 0
    // Predicated region
    $region2: #{graph_transformer_forward.9} parent=1 // pred_check
      _
    $region3: #{graph_transformer_forward.9} parent=1 // pred_check_branch
      %16 = sbr.rel (0) target = $region5
    $region4: #{graph_transformer_forward.9} parent=1 // pred_region
      _
    $region5: #{graph_transformer_forward.9} parent=1 // pred_fallthru
      _
    // Predicated region
    $region6: #{graph_transformer_forward.9} parent=1 // pred_check
      _
    $region7: #{graph_transformer_forward.9} parent=1 // pred_check_branch
      %18 = sbr.rel (0) target = $region9
    $region8: #{graph_transformer_forward.9} parent=1 // pred_region
      _
    $region9: #{graph_transformer_forward.9} parent=1 // pred_fallthru
      _
    // Predicated region
    $region10: #{graph_transformer_forward.9} parent=1 // pred_check
      _
    $region11: #{graph_transformer_forward.9} parent=1 // pred_check_branch
      %20 = sbr.rel (0) target = $region13
    $region12: #{graph_transformer_forward.9} parent=1 // pred_region
      _
    $region13: #{graph_transformer_forward.9} parent=1 // pred_fallthru
      _
    // Predicated region
    $region14: #{graph_transformer_forward.9} parent=1 // pred_check
      _
    $region15: #{graph_transformer_forward.9} parent=1 // pred_check_branch
      %22 = sbr.rel (0) target = $region17
    $region16: #{graph_transformer_forward.9} parent=1 // pred_region
      _
    $region17: #{graph_transformer_forward.9} parent=1 // pred_fallthru
      _
    // Predicated region
    $region18: #{graph_transformer_forward.9} parent=1 // pred_check
      _
    $region19: #{graph_transformer_forward.9} parent=1 // pred_check_branch
      %24 = sbr.rel (0) target = $region21
    $region20: #{graph_transformer_forward.9} parent=1 // pred_region
      _
    $region21: #{graph_transformer_forward.9} parent=1 // pred_fallthru
      _
    // Predicated region
    $region22: #{graph_transformer_forward.9} parent=1 // pred_check
      _
    $region23: #{graph_transformer_forward.9} parent=1 // pred_check_branch
      %26 = sbr.rel (0) target = $region25
    $region24: #{graph_transformer_forward.9} parent=1 // pred_region
      _
    $region25: #{graph_transformer_forward.9} parent=1 // pred_fallthru
      _
    %v27 = vld [vmem:[%s0] sm:$0xff]
    %vm28 = vcmask 261120
    %v29 = vsel %vm28, %v27, 0.0
    %30 = vadd.xlane.f32.xlu0 %v29
    %v31 = vpop.xlane.xlu0 %30
    %v32 = vrcp.pop 32.0
    %v33 = vmul.f32 32.0, %v32
    %v34 = vsub.f32 1.0, %v33
    %v35 = vmul.f32 %v32, %v34
    %v36 = vadd.f32 %v32, %v35
    %vm37 = vweird.f32 %v32
    %v38 = vsel %vm37, %v32, %v36
    %v39 = vmul.f32 %v31, %v38
    %v40 = vsub.f32 %v27, %v39
    %v41 = vmul.f32 %v40, %v40
    %v42 = vsel %vm28, %v41, 0.0
    %43 = vadd.xlane.f32.xlu0 %v42
    %v44 = vpop.xlane.xlu0 %43
    %v45 = vmul.f32 %v44, %v38
    %v46 = vadd.f32 %v45, 1e-05
    %v47 = vrsqrt.pop %v46
    %v48 = vmul.f32 %v47, %v46
    %v49 = vmul.f32 %v48, %v47
    %v50 = vmul.f32 0.5, %v49
    %v51 = vsub.f32 1.5, %v50
    %v52 = vmul.f32 %v47, %v51
    %vm53 = vweird.f32 %v46
    %vm54 = vweird.f32 %v47
    %vm55 = vmor %vm53, %vm54
    %v56 = vsel %vm55, %v47, %v52
    %v57 = vmul.f32 %v40, %v56
    %v58 = vld [vmem:[%s1] sm:$0xff]
    %v59 = vld [vmem:[%s1 + $0x8] sm:$0xff]
    %v60 = vld [vmem:[%s1 + $0x10] sm:$0xff]
    %v61 = vld [vmem:[%s1 + $0x18] sm:$0xff]
    %v63 = vsel %vm28, %v57, 0
    %65 = vmatpush.msra.mxu0 0.0
    %66 = vmatpush.msra.mxu0 0.0
    %67 = vmatpush.msra.mxu0 0.0
    %68 = vmatpush.msra.mxu0 0.0
    %69 = vmatpush.msra.mxu0 0.0
    %70 = vmatpush.msra.mxu0 0.0
    %71 = vmatpush.msra.mxu0 0.0
    %72 = vmatpush.msra.mxu0 0.0
    %73 = vmatpush.msra.mxu0 0.0
    %74 = vmatpush.msra.mxu0 0.0
    %75 = vmatpush.msra.mxu0 0.0
    %76 = vmatpush.msra.mxu0 0.0
    %77 = vmatpush.msra.mxu0 %v61
    %78 = vmatpush.msra.mxu0 %v60
    %79 = vmatpush.msra.mxu0 %v59
    %80 = vmatpush.msra.mxu0 %v58
    %81 = vmatmul.f32.gmra.mxu0 %v63
    %v82 = vpop.f32.mrf.mxu0
    %v83 = vadd.f32 0.0, %v82
    %84 = vdwg.mxu0
    %v85 = vlaneseq
    %v86 = vand.u32 %v85, 127
    %vm87 = vcmp.lt.s32.totalorder %v86, 8
    %v88 = vsel %vm87, %v83, -1e+30
    %89 = vmax.xlane.f32.xlu0 %v88
    %v90 = vpop.xlane.xlu0 %89
    %v91 = vsub.f32 %v88, %v90
    %v92 = vmul.f32 %v91, 1.442695
    %v93 = vpow.pop %v92
    %94 = vadd.xlane.f32.xlu0 %v93
    %v95 = vpop.xlane.xlu0 %94
    %v96 = vrcp.pop %v95
    %v97 = vmul.f32 %v95, %v96
    %v98 = vsub.f32 1.0, %v97
    %v99 = vmul.f32 %v96, %v98
    %v100 = vadd.f32 %v96, %v99
    %vm101 = vweird.f32 %v95
    %vm102 = vweird.f32 %v96
    %vm103 = vmor %vm101, %vm102
    %v104 = vsel %vm103, %v96, %v100
    %v105 = vand.u32 2147483647, %v95
    %vm106 = vcmp.eq.f32.partialorder %v105, 8.507059e+37
    %v107 = vand.u32 %v95, 2147483648
    %v108 = vor.u32 1.1754944e-38, %v107
    %v109 = vsel %vm106, %v108, %v104
    %v110 = vmul.f32 %v93, %v109
    %v111 = vld [vmem:[%s2] sm:$0xff]
    %v112 = vld [vmem:[%s2 + $0x8] sm:$0xff]
    %v113 = vld [vmem:[%s2 + $0x10] sm:$0xff]
    %v114 = vld [vmem:[%s2 + $0x18] sm:$0xff]
    %v115 = vld [vmem:[%s2 + $0x20] sm:$0xff]
    %v116 = vld [vmem:[%s2 + $0x28] sm:$0xff]
    %v117 = vld [vmem:[%s2 + $0x30] sm:$0xff]
    %v118 = vld [vmem:[%s2 + $0x38] sm:$0xff]
    %v119 = vld [vmem:[%s2 + $0x40] sm:$0xff]
    %v120 = vld [vmem:[%s2 + $0x48] sm:$0xff]
    %v121 = vld [vmem:[%s2 + $0x50] sm:$0xff]
    %v122 = vld [vmem:[%s2 + $0x58] sm:$0xff]
    %v123 = vld [vmem:[%s2 + $0x60] sm:$0xff]
    %v124 = vld [vmem:[%s2 + $0x68] sm:$0xff]
    %v125 = vld [vmem:[%s2 + $0x70] sm:$0xff]
    %v126 = vld [vmem:[%s2 + $0x78] sm:$0xff]
    %127 = vmatpush.msra.mxu0 %v126
    %128 = vmatpush.msra.mxu0 %v125
    %129 = vmatpush.msra.mxu0 %v124
    %130 = vmatpush.msra.mxu0 %v123
    %131 = vmatpush.msra.mxu0 %v122
    %132 = vmatpush.msra.mxu0 %v121
    %133 = vmatpush.msra.mxu0 %v120
    %134 = vmatpush.msra.mxu0 %v119
    %135 = vmatpush.msra.mxu0 %v118
    %136 = vmatpush.msra.mxu0 %v117
    %137 = vmatpush.msra.mxu0 %v116
    %138 = vmatpush.msra.mxu0 %v115
    %139 = vmatpush.msra.mxu0 %v114
    %140 = vmatpush.msra.mxu0 %v113
    %141 = vmatpush.msra.mxu0 %v112
    %142 = vmatpush.msra.mxu0 %v111
    %143 = vmatmul.f32.gmra.mxu0 %v110
    %v144 = vpop.f32.mrf.mxu0
    %v145 = vadd.f32 0.0, %v144
    %146 = vdwg.mxu0
    %v147 = vmul.f32 %v145, 0.75
    %v148 = vld [vmem:[%s3] sm:$0xff]
    %v149 = vmul.f32 %v148, 0.25
    %v150 = vadd.f32 %v147, %v149
    %v151 = vld [vmem:[%s4] sm:$0xff]
    %v152 = vld [vmem:[%s4 + $0x8] sm:$0xff]
    %v153 = vld [vmem:[%s4 + $0x10] sm:$0xff]
    %v154 = vld [vmem:[%s4 + $0x18] sm:$0xff]
    %v155 = vld [vmem:[%s5] sm:$0x1]
    %v157 = vperm.slane %v155, 0
    %v160 = vsel %vm28, %v150, 0
    %162 = vmatpush.msra.mxu0 0.0
    %163 = vmatpush.msra.mxu0 0.0
    %164 = vmatpush.msra.mxu0 0.0
    %165 = vmatpush.msra.mxu0 0.0
    %166 = vmatpush.msra.mxu0 0.0
    %167 = vmatpush.msra.mxu0 0.0
    %168 = vmatpush.msra.mxu0 0.0
    %169 = vmatpush.msra.mxu0 0.0
    %170 = vmatpush.msra.mxu0 0.0
    %171 = vmatpush.msra.mxu0 0.0
    %172 = vmatpush.msra.mxu0 0.0
    %173 = vmatpush.msra.mxu0 0.0
    %174 = vmatpush.msra.mxu0 %v154
    %175 = vmatpush.msra.mxu0 %v153
    %176 = vmatpush.msra.mxu0 %v152
    %177 = vmatpush.msra.mxu0 %v151
    %178 = vmatmul.f32.gmra.mxu0 %v160
    %v179 = vpop.f32.mrf.mxu0
    %v180 = vadd.f32 %v157, %v179
    %181 = vdwg.mxu0
    %182 = vst [vmem:[#allocation2] sm:$0xff] %v180
    %183 = vst [vmem:[#allocation4] sm:$0xff] %v110
    // Predicated region
    $region26: #{graph_transformer_forward.9} parent=1 // pred_check
      _
    $region27: #{graph_transformer_forward.9} parent=1 // pred_check_branch
      %185 = sbr.rel (0) target = $region29
    $region28: #{graph_transformer_forward.9} parent=1 // pred_region
      %187 = vsyncadd [#allocation3], 0
      %s189 = sshll.u32 [#allocation2], 4
      %s190 = int_to_ptr.vmem [resolvable:$true] %s189
      %s191 = sshll.u32 %s6, 4
      %s192 = int_to_ptr.hbm [resolvable:$true] %s191
      %194 = dma.vmem_to_hbm [thread:$0]  %s190, 128, %s192, [#allocation3]
    $region29: #{graph_transformer_forward.9} parent=1 // pred_fallthru
      _
    // Predicated region
    $region30: #{graph_transformer_forward.9} parent=1 // pred_check
      _
    $region31: #{graph_transformer_forward.9} parent=1 // pred_check_branch
      %196 = sbr.rel (0) target = $region33
    $region32: #{graph_transformer_forward.9} parent=1 // pred_region
      %198 = vsyncadd [#allocation5], 0
      %s200 = sshll.u32 [#allocation4], 4
      %s201 = int_to_ptr.vmem [resolvable:$true] %s200
      %s202 = sshll.u32 %s7, 4
      %s203 = int_to_ptr.hbm [resolvable:$true] %s202
      %205 = dma.vmem_to_hbm [thread:$0]  %s201, 128, %s203, [#allocation5]
    $region33: #{graph_transformer_forward.9} parent=1 // pred_fallthru
      _
    // Predicated region
    $region34: #{graph_transformer_forward.9} parent=1 // pred_check
      _
    $region35: #{graph_transformer_forward.9} parent=1 // pred_check_branch
      %207 = sbr.rel (0) target = $region37
    $region36: #{graph_transformer_forward.9} parent=1 // pred_region
      %209 = dma.done [#allocation3], 128
    $region37: #{graph_transformer_forward.9} parent=1 // pred_fallthru
      _
    // Predicated region
    $region38: #{graph_transformer_forward.9} parent=1 // pred_check
      _
    $region39: #{graph_transformer_forward.9} parent=1 // pred_check_branch
      %211 = sbr.rel (0) target = $region41
    $region40: #{graph_transformer_forward.9} parent=1 // pred_region
      %213 = dma.done [#allocation5], 128
    $region41: #{graph_transformer_forward.9} parent=1 // pred_fallthru
      _
    %214 = vsyncpa [#allocation3], 1
    %215 = vsyncpa [#allocation5], 1

</llo_original>
